<compile_context>
chip_gen: v7x
topology: tpu7x:2x2x1
jax: 0.10.0
libtpu: 0.0.40
codegen_flags: <defaults>
</compile_context>

<pallas_src>
import math

import jax
import jax.numpy as jnp
from jax.experimental import pallas as pl
from jax.experimental.pallas import tpu as pltpu


_LANE = 1024                    # wide, lane-dense last dim (multiple of 128)
_MAX_BLOCK_BYTES = 1 << 20      # ~1 MiB per-tensor block -> 14 MiB live w/ dbl-buffer


def _round_up(x, m):
    return (x + m - 1) // m * m


def _make_lcne_kernel(w_x, w_h, w_lc, w_c, b, lam_wlc):
    """Elementwise LC-NE update; scalar params are trace-time constants."""

    def kernel(x_ref, stress_ref, prev_lc_ref, prev_c_ref,
               lc_out_ref, ne_out_ref, c_out_ref):
        # I/O stays in native dtype; compute in f32 (VPU + EUP tanh/sigmoid).
        x = x_ref[...].astype(jnp.float32)
        stress = stress_ref[...].astype(jnp.float32)
        prev_lc = prev_lc_ref[...].astype(jnp.float32)
        prev_c = prev_c_ref[...].astype(jnp.float32)

        lc_t = jnp.tanh(w_x * x + w_h * prev_lc + b + stress)
        ne_t = jax.nn.sigmoid(w_lc * lc_t)
        c_t = prev_c + lam_wlc * ne_t + w_c * x

        lc_out_ref[...] = lc_t.astype(lc_out_ref.dtype)
        ne_out_ref[...] = ne_t.astype(ne_out_ref.dtype)
        c_out_ref[...] = c_t.astype(c_out_ref.dtype)

    return kernel


def untrained_lcfcn_forward(x_t, stress_t, prev_lc, prev_cortex, *,
                            lambda_cortex,
                            w_x=0.5, w_h=0.7, w_lc=0.8, w_c=0.5, b=0.1,
                            alias_prev_state=True):
    """JAX/Pallas equivalent of UntrainedLCFCN.forward.

    All four tensor inputs must share the same shape (elementwise math).
    `lambda_cortex` and the weights must be Python floats (trace-time consts),
    matching the PyTorch module where they are fixed, untrained parameters.
    """
    orig_shape = x_t.shape
    dtype = x_t.dtype
    n = math.prod(orig_shape) if orig_shape else 1
    itemsize = jnp.dtype(dtype).itemsize

    # Block rows: ~1 MiB per tensor block, sublane-aligned.
    tr = max(8, (_MAX_BLOCK_BYTES // (_LANE * itemsize)) // 8 * 8)

    # Pad the flattened length so the slab is (rows, _LANE) with rows a
    # multiple of both 8 (sublane) and the block row count (even grid).
    rows = _round_up(pl.cdiv(n, _LANE), 8)
    tr = min(tr, rows)
    rows = _round_up(rows, tr)
    padded_n = rows * _LANE

    def prep(a):
        flat = a.astype(dtype).reshape(-1)
        if padded_n != n:
            flat = jnp.pad(flat, (0, padded_n - n))
        return flat.reshape(rows, _LANE)

    kernel = _make_lcne_kernel(
        float(w_x), float(w_h), float(w_lc), float(w_c), float(b),
        float(lambda_cortex) * float(w_lc))

    spec = pl.BlockSpec((tr, _LANE), lambda i: (i, 0))
    out_sds = jax.ShapeDtypeStruct((rows, _LANE), dtype)

    extra = {}
    if alias_prev_state:
        # prev_LC -> LC_t, prev_Cortex -> C_t (inputs are 0:x 1:stress 2:prev_lc 3:prev_c)
        extra["input_output_aliases"] = {2: 0, 3: 2}

    lc_t, ne_t, c_t = pl.pallas_call(
        kernel,
        out_shape=(out_sds, out_sds, out_sds),
        grid=(rows // tr,),
        in_specs=[spec, spec, spec, spec],
        out_specs=(spec, spec, spec),
        compiler_params=pltpu.CompilerParams(
            dimension_semantics=("parallel",),
            vmem_limit_bytes=32 * 1024 * 1024),
        cost_estimate=pl.CostEstimate(
            flops=10 * padded_n,
            transcendentals=2 * padded_n,
            bytes_accessed=7 * padded_n * itemsize),
        **extra,
    )(prep(x_t), prep(stress_t), prep(prev_lc), prep(prev_cortex))

    def unprep(a):
        return a.reshape(-1)[:n].reshape(orig_shape)

    return unprep(lc_t), unprep(ne_t), unprep(c_t)


def _reference_forward(x_t, stress_t, prev_lc, prev_cortex, lambda_cortex,
                       w_x=0.5, w_h=0.7, w_lc=0.8, w_c=0.5, b=0.1):
    lc_t = jnp.tanh(w_x * x_t + w_h * prev_lc + b + stress_t)
    ne_t = jax.nn.sigmoid(w_lc * lc_t)
    c_t = prev_cortex + lambda_cortex * w_lc * ne_t + w_c * x_t
    return lc_t, ne_t, c_t


if __name__ == "__main__":
    key = jax.random.PRNGKey(0)
    k1, k2, k3, k4 = jax.random.split(key, 4)

    # NCHW-shaped inputs consistent with an FCN-style LCNE usage.
    shape = (2, 4, 16, 16)
    x_t = jax.random.normal(k1, shape, dtype=jnp.float32)
    stress_t = jax.random.normal(k2, shape, dtype=jnp.float32) * 0.1
    prev_lc = jax.random.normal(k3, shape, dtype=jnp.float32) * 0.1
    prev_cortex = jax.random.normal(k4, shape, dtype=jnp.float32) * 0.1

    lambda_cortex = 0.3

    # Reference computed first (inputs are conceptually donated via aliasing).
    lc_ref, ne_ref, c_ref = _reference_forward(
        x_t, stress_t, prev_lc, prev_cortex, lambda_cortex)
    jax.block_until_ready((lc_ref, ne_ref, c_ref))

    lc_t, ne_t, c_t = untrained_lcfcn_forward(
        x_t, stress_t, prev_lc, prev_cortex, lambda_cortex=lambda_cortex)
    jax.block_until_ready((lc_t, ne_t, c_t))

    assert lc_t.shape == shape and ne_t.shape == shape and c_t.shape == shape
    assert jnp.allclose(lc_t, lc_ref, atol=1e-5, rtol=1e-5)
    assert jnp.allclose(ne_t, ne_ref, atol=1e-5, rtol=1e-5)
    assert jnp.allclose(c_t, c_ref, atol=1e-5, rtol=1e-5)

    print("KERNEL_OK")
</pallas_src>

<mosaic_0001>
module attributes {stable_mosaic.version = 11 : i64} {
  func.func @kernel(%arg0: i32, %arg1: memref<8x1024xf32, #tpu.memory_space<vmem>>, %arg2: memref<8x1024xf32, #tpu.memory_space<vmem>>, %arg3: memref<8x1024xf32, #tpu.memory_space<vmem>>, %arg4: memref<8x1024xf32, #tpu.memory_space<vmem>>, %arg5: memref<8x1024xf32, #tpu.memory_space<vmem>>, %arg6: memref<8x1024xf32, #tpu.memory_space<vmem>>, %arg7: memref<8x1024xf32, #tpu.memory_space<vmem>>) attributes {dimension_semantics = [#tpu.dimension_semantics<parallel>], iteration_bounds = array<i64: 1>, scalar_prefetch = 0 : i64, scratch_operands = 0 : i64, tpu.core_type = #tpu.core_type<tc>, window_params = [{transform_indices = @transform_0, window_bounds = array<i64: 8, 1024>}, {transform_indices = @transform_1, window_bounds = array<i64: 8, 1024>}, {transform_indices = @transform_2, window_bounds = array<i64: 8, 1024>}, {transform_indices = @transform_3, window_bounds = array<i64: 8, 1024>}, {transform_indices = @transform_4, window_bounds = array<i64: 8, 1024>}, {transform_indices = @transform_5, window_bounds = array<i64: 8, 1024>}, {transform_indices = @transform_6, window_bounds = array<i64: 8, 1024>}]} {
    %c0 = arith.constant 0 : index
    %c0_0 = arith.constant 0 : index
    %0 = vector.load %arg1[%c0, %c0_0] : memref<8x1024xf32, #tpu.memory_space<vmem>>, vector<8x1024xf32>
    %c0_1 = arith.constant 0 : index
    %c0_2 = arith.constant 0 : index
    %1 = vector.load %arg2[%c0_1, %c0_2] : memref<8x1024xf32, #tpu.memory_space<vmem>>, vector<8x1024xf32>
    %c0_3 = arith.constant 0 : index
    %c0_4 = arith.constant 0 : index
    %2 = vector.load %arg3[%c0_3, %c0_4] : memref<8x1024xf32, #tpu.memory_space<vmem>>, vector<8x1024xf32>
    %c0_5 = arith.constant 0 : index
    %c0_6 = arith.constant 0 : index
    %3 = vector.load %arg4[%c0_5, %c0_6] : memref<8x1024xf32, #tpu.memory_space<vmem>>, vector<8x1024xf32>
    %cst = arith.constant 5.000000e-01 : f32
    %4 = vector.broadcast %cst : f32 to vector<8x1024xf32>
    %5 = arith.mulf %4, %0 : vector<8x1024xf32>
    %cst_7 = arith.constant 0.699999988 : f32
    %6 = vector.broadcast %cst_7 : f32 to vector<8x1024xf32>
    %7 = arith.mulf %6, %2 : vector<8x1024xf32>
    %8 = arith.addf %5, %7 : vector<8x1024xf32>
    %cst_8 = arith.constant 1.000000e-01 : f32
    %9 = vector.broadcast %cst_8 : f32 to vector<8x1024xf32>
    %10 = arith.addf %8, %9 : vector<8x1024xf32>
    %11 = arith.addf %10, %1 : vector<8x1024xf32>
    %12 = math.tanh %11 : vector<8x1024xf32>
    %cst_9 = arith.constant 8.000000e-01 : f32
    %13 = vector.broadcast %cst_9 : f32 to vector<8x1024xf32>
    %14 = arith.mulf %13, %12 : vector<8x1024xf32>
    %15 = arith.negf %14 : vector<8x1024xf32>
    %16 = math.exp %15 : vector<8x1024xf32>
    %cst_10 = arith.constant 1.000000e+00 : f32
    %17 = vector.broadcast %cst_10 : f32 to vector<8x1024xf32>
    %18 = arith.addf %17, %16 : vector<8x1024xf32>
    %19 = arith.divf %17, %18 : vector<8x1024xf32>
    %cst_11 = arith.constant 2.400000e-01 : f32
    %20 = vector.broadcast %cst_11 : f32 to vector<8x1024xf32>
    %21 = arith.mulf %20, %19 : vector<8x1024xf32>
    %22 = arith.addf %3, %21 : vector<8x1024xf32>
    %cst_12 = arith.constant 5.000000e-01 : f32
    %23 = vector.broadcast %cst_12 : f32 to vector<8x1024xf32>
    %24 = arith.mulf %23, %0 : vector<8x1024xf32>
    %25 = arith.addf %22, %24 : vector<8x1024xf32>
    %c0_13 = arith.constant 0 : index
    %c0_14 = arith.constant 0 : index
    %26 = vector.load %arg5[%c0_13, %c0_14] : memref<8x1024xf32, #tpu.memory_space<vmem>>, vector<8x1024xf32>
    tpu.vector_store %arg5[%c0_13, %c0_14], %12 {strides = array<i32>} : memref<8x1024xf32, #tpu.memory_space<vmem>>, vector<8x1024xf32>,
    %c0_15 = arith.constant 0 : index
    %c0_16 = arith.constant 0 : index
    %27 = vector.load %arg6[%c0_15, %c0_16] : memref<8x1024xf32, #tpu.memory_space<vmem>>, vector<8x1024xf32>
    tpu.vector_store %arg6[%c0_15, %c0_16], %19 {strides = array<i32>} : memref<8x1024xf32, #tpu.memory_space<vmem>>, vector<8x1024xf32>,
    %c0_17 = arith.constant 0 : index
    %c0_18 = arith.constant 0 : index
    %28 = vector.load %arg7[%c0_17, %c0_18] : memref<8x1024xf32, #tpu.memory_space<vmem>>, vector<8x1024xf32>
    tpu.vector_store %arg7[%c0_17, %c0_18], %25 {strides = array<i32>} : memref<8x1024xf32, #tpu.memory_space<vmem>>, vector<8x1024xf32>,
    return
  }
  func.func @transform_0(%arg0: i32) -> (i32, i32) {
    %c0_i32 = arith.constant 0 : i32
    %c0_i32_0 = arith.constant 0 : i32
    return %arg0, %c0_i32 : i32, i32
  }
  func.func @transform_1(%arg0: i32) -> (i32, i32) {
    %c0_i32 = arith.constant 0 : i32
    %c0_i32_0 = arith.constant 0 : i32
    return %arg0, %c0_i32 : i32, i32
  }
  func.func @transform_2(%arg0: i32) -> (i32, i32) {
    %c0_i32 = arith.constant 0 : i32
    %c0_i32_0 = arith.constant 0 : i32
    return %arg0, %c0_i32 : i32, i32
  }
  func.func @transform_3(%arg0: i32) -> (i32, i32) {
    %c0_i32 = arith.constant 0 : i32
    %c0_i32_0 = arith.constant 0 : i32
    return %arg0, %c0_i32 : i32, i32
  }
  func.func @transform_4(%arg0: i32) -> (i32, i32) {
    %c0_i32 = arith.constant 0 : i32
    %c0_i32_0 = arith.constant 0 : i32
    return %arg0, %c0_i32 : i32, i32
  }
  func.func @transform_5(%arg0: i32) -> (i32, i32) {
    %c0_i32 = arith.constant 0 : i32
    %c0_i32_0 = arith.constant 0 : i32
    return %arg0, %c0_i32 : i32, i32
  }
  func.func @transform_6(%arg0: i32) -> (i32, i32) {
    %c0_i32 = arith.constant 0 : i32
    %c0_i32_0 = arith.constant 0 : i32
    return %arg0, %c0_i32 : i32, i32
  }
}

</mosaic_0001>

<llo_original>
// kernel: tpu_custom_call.1
$region0: #{tpu_custom_call.1}
  #allocation0 [shape = 'u32[]', space=smem, size = 0x4, offset = 0x4, fixed_abs, tag = 'smem constant byte address 0x4 - core index']
  #allocation1 [shape = 'u32[144,128]{1,0:T(1,128)}', space=vmem, size = 0x12000, scoped, tag = 'internal scratch']
  %s0 = inlined_call_operand.vmem [shape: f32[8,1024], index: 0, kind: input, shape index: {}]
  %s1 = inlined_call_operand.vmem [shape: f32[8,1024], index: 1, kind: input, shape index: {}]
  %s2 = inlined_call_operand.hbm [shape: f32[8,1024], index: 2, kind: input, shape index: {}, may-alias: {2,4}]
  %s3 = inlined_call_operand.hbm [shape: f32[8,1024], index: 3, kind: input, shape index: {}, may-alias: {3,6}]
  %s4 = inlined_call_operand.hbm [shape: f32[8,1024], index: 4, kind: output, shape index: {0}, may-alias: {2,4}]
  %s5 = inlined_call_operand.hbm [shape: f32[8,1024], index: 5, kind: output, shape index: {1}]
  %s6 = inlined_call_operand.hbm [shape: f32[8,1024], index: 6, kind: output, shape index: {2}, may-alias: {3,6}]
  %7 = xla_tuple %s4, %s5, %s6
  %s8 = sld [smem:[#allocation0]]
  $region50: #{tpu_custom_call.1} parent=0
    _
  %s10 = ssub.s32 1, %s8
  %s11 = scalar_select 0, %s10, %s8
  $region1: #{tpu_custom_call.1} parent=0
    #allocation2 [shape = 'u8[32768]{0}', space=vmem, size = 0x8000, scoped, tag = 'input window, operand 2, single buffered']
    #allocation3 [shape = 's32[1]{0}', space=sflag, size = 0x4, scoped, tag = 'scoped memory for tpu_custom_call.1']
    #allocation4 [shape = 's32[1]{0}', space=sflag, size = 0x4, scoped, tag = 'scoped memory for tpu_custom_call.1']
    #allocation5 [shape = 'u8[32768]{0}', space=vmem, size = 0x8000, scoped, tag = 'input window, operand 3, single buffered']
    #allocation6 [shape = 's32[1]{0}', space=sflag, size = 0x4, scoped, tag = 'scoped memory for tpu_custom_call.1']
    #allocation7 [shape = 'u8[32768]{0}', space=vmem, size = 0x8000, scoped, tag = 'output window, operand 0, single buffered']
    #allocation8 [shape = 'u8[32768]{0}', space=vmem, size = 0x8000, scoped, tag = 'output window, operand 1, single buffered']
    #allocation9 [shape = 's32[1]{0}', space=sflag, size = 0x4, scoped, tag = 'scoped memory for tpu_custom_call.1']
    #allocation10 [shape = 'u8[32768]{0}', space=vmem, size = 0x8000, scoped, tag = 'output window, operand 2, single buffered']
    %12 = vsyncpa [#allocation3], 0
    %13 = vsyncpa [#allocation6], 0
    %14 = vsyncpa [#allocation4], 0
    %15 = vsyncpa [#allocation9], 0
    // Predicated region
    $region2: #{tpu_custom_call.1} parent=1 // pred_check
      _
    $region3: #{tpu_custom_call.1} parent=1 // pred_check_branch
      %17 = sbr.rel (0) target = $region5
    $region4: #{tpu_custom_call.1} parent=1 // pred_region
      _
    $region5: #{tpu_custom_call.1} parent=1 // pred_fallthru
      _
    // Predicated region
    $region6: #{tpu_custom_call.1} parent=1 // pred_check
      _
    $region7: #{tpu_custom_call.1} parent=1 // pred_check_branch
      %19 = sbr.rel (0) target = $region9
    $region8: #{tpu_custom_call.1} parent=1 // pred_region
      _
    $region9: #{tpu_custom_call.1} parent=1 // pred_fallthru
      _
    // Predicated region
    $region10: #{tpu_custom_call.1} parent=1 // pred_check
      _
    $region11: #{tpu_custom_call.1} parent=1 // pred_check_branch
      %21 = sbr.rel (0) target = $region13
    $region12: #{tpu_custom_call.1} parent=1 // pred_region
      %s23 = ssub.s32 1024, 1024
      %24 = vsyncadd [#allocation3], %s23
      %s26 = sshll.u32 [#allocation2], 4
      %s27 = int_to_ptr.vmem [resolvable:$true] %s26
      %29 = dma.hbm_to_vmem [thread:$0]  %s2, 1024, %s27, [#allocation3]
    $region13: #{tpu_custom_call.1} parent=1 // pred_fallthru
      _
    // Predicated region
    $region14: #{tpu_custom_call.1} parent=1 // pred_check
      _
    $region15: #{tpu_custom_call.1} parent=1 // pred_check_branch
      %31 = sbr.rel (0) target = $region17
    $region16: #{tpu_custom_call.1} parent=1 // pred_region
      %s33 = ssub.s32 1024, 1024
      %34 = vsyncadd [#allocation6], %s33
      %s36 = sshll.u32 [#allocation5], 4
      %s37 = int_to_ptr.vmem [resolvable:$true] %s36
      %39 = dma.hbm_to_vmem [thread:$0]  %s3, 1024, %s37, [#allocation6]
    $region17: #{tpu_custom_call.1} parent=1 // pred_fallthru
      _
    // Predicated region
    $region18: #{tpu_custom_call.1} parent=1 // pred_check
      _
    $region19: #{tpu_custom_call.1} parent=1 // pred_check_branch
      %41 = sbr.rel (0) target = $region21
    $region20: #{tpu_custom_call.1} parent=1 // pred_region
      %42 = dma.done [#allocation3], 1024
    $region21: #{tpu_custom_call.1} parent=1 // pred_fallthru
      _
    // Predicated region
    $region22: #{tpu_custom_call.1} parent=1 // pred_check
      _
    $region23: #{tpu_custom_call.1} parent=1 // pred_check_branch
      %44 = sbr.rel (0) target = $region25
    $region24: #{tpu_custom_call.1} parent=1 // pred_region
      %45 = dma.done [#allocation6], 1024
    $region25: #{tpu_custom_call.1} parent=1 // pred_fallthru
      _
    %v46 = vld [vmem:[%s0] sm:$0xff]
    %v47 = vld [vmem:[%s0 + $0x8] sm:$0xff]
    %v48 = vld [vmem:[%s0 + $0x10] sm:$0xff]
    %v49 = vld [vmem:[%s0 + $0x18] sm:$0xff]
    %v50 = vld [vmem:[%s0 + $0x20] sm:$0xff]
    %v51 = vld [vmem:[%s0 + $0x28] sm:$0xff]
    %v52 = vld [vmem:[%s0 + $0x30] sm:$0xff]
    %v53 = vld [vmem:[%s0 + $0x38] sm:$0xff]
    %v54 = vld [vmem:[%s1] sm:$0xff]
    %v55 = vld [vmem:[%s1 + $0x8] sm:$0xff]
    %v56 = vld [vmem:[%s1 + $0x10] sm:$0xff]
    %v57 = vld [vmem:[%s1 + $0x18] sm:$0xff]
    %v58 = vld [vmem:[%s1 + $0x20] sm:$0xff]
    %v59 = vld [vmem:[%s1 + $0x28] sm:$0xff]
    %v60 = vld [vmem:[%s1 + $0x30] sm:$0xff]
    %v61 = vld [vmem:[%s1 + $0x38] sm:$0xff]
    %v62 = vld [vmem:[#allocation2] sm:$0xff]
    %v63 = vld [vmem:[#allocation2 + $0x8] sm:$0xff]
    %v64 = vld [vmem:[#allocation2 + $0x10] sm:$0xff]
    %v65 = vld [vmem:[#allocation2 + $0x18] sm:$0xff]
    %v66 = vld [vmem:[#allocation2 + $0x20] sm:$0xff]
    %v67 = vld [vmem:[#allocation2 + $0x28] sm:$0xff]
    %v68 = vld [vmem:[#allocation2 + $0x30] sm:$0xff]
    %v69 = vld [vmem:[#allocation2 + $0x38] sm:$0xff]
    %v70 = vld [vmem:[#allocation5] sm:$0xff]
    %v71 = vld [vmem:[#allocation5 + $0x8] sm:$0xff]
    %v72 = vld [vmem:[#allocation5 + $0x10] sm:$0xff]
    %v73 = vld [vmem:[#allocation5 + $0x18] sm:$0xff]
    %v74 = vld [vmem:[#allocation5 + $0x20] sm:$0xff]
    %v75 = vld [vmem:[#allocation5 + $0x28] sm:$0xff]
    %v76 = vld [vmem:[#allocation5 + $0x30] sm:$0xff]
    %v77 = vld [vmem:[#allocation5 + $0x38] sm:$0xff]
    %v78 = vmul.f32 %v46, 0.5
    %v79 = vmul.f32 %v47, 0.5
    %v80 = vmul.f32 %v48, 0.5
    %v81 = vmul.f32 %v49, 0.5
    %v82 = vmul.f32 %v50, 0.5
    %v83 = vmul.f32 %v51, 0.5
    %v84 = vmul.f32 %v52, 0.5
    %v85 = vmul.f32 %v53, 0.5
    %v86 = vmul.f32 %v62, 0.7
    %v87 = vmul.f32 %v63, 0.7
    %v88 = vmul.f32 %v64, 0.7
    %v89 = vmul.f32 %v65, 0.7
    %v90 = vmul.f32 %v66, 0.7
    %v91 = vmul.f32 %v67, 0.7
    %v92 = vmul.f32 %v68, 0.7
    %v93 = vmul.f32 %v69, 0.7
    %v94 = vadd.f32 %v78, %v86
    %v95 = vadd.f32 %v79, %v87
    %v96 = vadd.f32 %v80, %v88
    %v97 = vadd.f32 %v81, %v89
    %v98 = vadd.f32 %v82, %v90
    %v99 = vadd.f32 %v83, %v91
    %v100 = vadd.f32 %v84, %v92
    %v101 = vadd.f32 %v85, %v93
    %v102 = vadd.f32 %v94, 0.1
    %v103 = vadd.f32 %v95, 0.1
    %v104 = vadd.f32 %v96, 0.1
    %v105 = vadd.f32 %v97, 0.1
    %v106 = vadd.f32 %v98, 0.1
    %v107 = vadd.f32 %v99, 0.1
    %v108 = vadd.f32 %v100, 0.1
    %v109 = vadd.f32 %v101, 0.1
    %v110 = vadd.f32 %v102, %v54
    %v111 = vadd.f32 %v103, %v55
    %v112 = vadd.f32 %v104, %v56
    %v113 = vadd.f32 %v105, %v57
    %v114 = vadd.f32 %v106, %v58
    %v115 = vadd.f32 %v107, %v59
    %v116 = vadd.f32 %v108, %v60
    %v117 = vadd.f32 %v109, %v61
    %v118 = vtanh.pop %v110
    %v119 = vtanh.pop %v111
    %v120 = vtanh.pop %v112
    %v121 = vtanh.pop %v113
    %v122 = vtanh.pop %v114
    %v123 = vtanh.pop %v115
    %v124 = vtanh.pop %v116
    %v125 = vtanh.pop %v117
    %v126 = vmul.f32 %v118, 0.8
    %v127 = vmul.f32 %v119, 0.8
    %v128 = vmul.f32 %v120, 0.8
    %v129 = vmul.f32 %v121, 0.8
    %v130 = vmul.f32 %v122, 0.8
    %v131 = vmul.f32 %v123, 0.8
    %v132 = vmul.f32 %v124, 0.8
    %v133 = vmul.f32 %v125, 0.8
    %v134 = vxor.u32 %v126, 2147483648
    %v135 = vxor.u32 %v127, 2147483648
    %v136 = vxor.u32 %v128, 2147483648
    %v137 = vxor.u32 %v129, 2147483648
    %v138 = vxor.u32 %v130, 2147483648
    %v139 = vxor.u32 %v131, 2147483648
    %v140 = vxor.u32 %v132, 2147483648
    %v141 = vxor.u32 %v133, 2147483648
    %v142 = vmul.f32 %v134, 1.442695
    %v143 = vpow.pop %v142
    %v144 = vmul.f32 %v135, 1.442695
    %v145 = vpow.pop %v144
    %v146 = vmul.f32 %v136, 1.442695
    %v147 = vpow.pop %v146
    %v148 = vmul.f32 %v137, 1.442695
    %v149 = vpow.pop %v148
    %v150 = vmul.f32 %v138, 1.442695
    %v151 = vpow.pop %v150
    %v152 = vmul.f32 %v139, 1.442695
    %v153 = vpow.pop %v152
    %v154 = vmul.f32 %v140, 1.442695
    %v155 = vpow.pop %v154
    %v156 = vmul.f32 %v141, 1.442695
    %v157 = vpow.pop %v156
    %v158 = vadd.f32 %v143, 1.0
    %v159 = vadd.f32 %v145, 1.0
    %v160 = vadd.f32 %v147, 1.0
    %v161 = vadd.f32 %v149, 1.0
    %v162 = vadd.f32 %v151, 1.0
    %v163 = vadd.f32 %v153, 1.0
    %v164 = vadd.f32 %v155, 1.0
    %v165 = vadd.f32 %v157, 1.0
    %v166 = vrcp.pop %v158
    %v167 = vmul.f32 1.0, %v166
    %v168 = vrcp.pop %v159
    %v169 = vmul.f32 1.0, %v168
    %v170 = vrcp.pop %v160
    %v171 = vmul.f32 1.0, %v170
    %v172 = vrcp.pop %v161
    %v173 = vmul.f32 1.0, %v172
    %v174 = vrcp.pop %v162
    %v175 = vmul.f32 1.0, %v174
    %v176 = vrcp.pop %v163
    %v177 = vmul.f32 1.0, %v176
    %v178 = vrcp.pop %v164
    %v179 = vmul.f32 1.0, %v178
    %v180 = vrcp.pop %v165
    %v181 = vmul.f32 1.0, %v180
    %v182 = vmul.f32 %v167, 0.24
    %v183 = vmul.f32 %v169, 0.24
    %v184 = vmul.f32 %v171, 0.24
    %v185 = vmul.f32 %v173, 0.24
    %v186 = vmul.f32 %v175, 0.24
    %v187 = vmul.f32 %v177, 0.24
    %v188 = vmul.f32 %v179, 0.24
    %v189 = vmul.f32 %v181, 0.24
    %v190 = vadd.f32 %v70, %v182
    %v191 = vadd.f32 %v71, %v183
    %v192 = vadd.f32 %v72, %v184
    %v193 = vadd.f32 %v73, %v185
    %v194 = vadd.f32 %v74, %v186
    %v195 = vadd.f32 %v75, %v187
    %v196 = vadd.f32 %v76, %v188
    %v197 = vadd.f32 %v77, %v189
    %v198 = vadd.f32 %v190, %v78
    %v199 = vadd.f32 %v191, %v79
    %v200 = vadd.f32 %v192, %v80
    %v201 = vadd.f32 %v193, %v81
    %v202 = vadd.f32 %v194, %v82
    %v203 = vadd.f32 %v195, %v83
    %v204 = vadd.f32 %v196, %v84
    %v205 = vadd.f32 %v197, %v85
    %206 = vst [vmem:[#allocation7] sm:$0xff] %v118
    %207 = vst [vmem:[#allocation7 + $0x8] sm:$0xff] %v119
    %208 = vst [vmem:[#allocation7 + $0x10] sm:$0xff] %v120
    %209 = vst [vmem:[#allocation7 + $0x18] sm:$0xff] %v121
    %210 = vst [vmem:[#allocation7 + $0x20] sm:$0xff] %v122
    %211 = vst [vmem:[#allocation7 + $0x28] sm:$0xff] %v123
    %212 = vst [vmem:[#allocation7 + $0x30] sm:$0xff] %v124
    %213 = vst [vmem:[#allocation7 + $0x38] sm:$0xff] %v125
    %214 = vst [vmem:[#allocation8] sm:$0xff] %v167
    %215 = vst [vmem:[#allocation8 + $0x8] sm:$0xff] %v169
    %216 = vst [vmem:[#allocation8 + $0x10] sm:$0xff] %v171
    %217 = vst [vmem:[#allocation8 + $0x18] sm:$0xff] %v173
    %218 = vst [vmem:[#allocation8 + $0x20] sm:$0xff] %v175
    %219 = vst [vmem:[#allocation8 + $0x28] sm:$0xff] %v177
    %220 = vst [vmem:[#allocation8 + $0x30] sm:$0xff] %v179
    %221 = vst [vmem:[#allocation8 + $0x38] sm:$0xff] %v181
    %222 = vst [vmem:[#allocation10] sm:$0xff] %v198
    %223 = vst [vmem:[#allocation10 + $0x8] sm:$0xff] %v199
    %224 = vst [vmem:[#allocation10 + $0x10] sm:$0xff] %v200
    %225 = vst [vmem:[#allocation10 + $0x18] sm:$0xff] %v201
    %226 = vst [vmem:[#allocation10 + $0x20] sm:$0xff] %v202
    %227 = vst [vmem:[#allocation10 + $0x28] sm:$0xff] %v203
    %228 = vst [vmem:[#allocation10 + $0x30] sm:$0xff] %v204
    %229 = vst [vmem:[#allocation10 + $0x38] sm:$0xff] %v205
    // Predicated region
    $region26: #{tpu_custom_call.1} parent=1 // pred_check
      _
    $region27: #{tpu_custom_call.1} parent=1 // pred_check_branch
      %231 = sbr.rel (0) target = $region29
    $region28: #{tpu_custom_call.1} parent=1 // pred_region
      %s233 = ssub.s32 1024, 1024
      %234 = vsyncadd [#allocation4], %s233
      %s236 = sshll.u32 [#allocation7], 4
      %s237 = int_to_ptr.vmem [resolvable:$true] %s236
      %239 = dma.vmem_to_hbm [thread:$0]  %s237, 1024, %s4, [#allocation4]
    $region29: #{tpu_custom_call.1} parent=1 // pred_fallthru
      _
    // Predicated region
    $region30: #{tpu_custom_call.1} parent=1 // pred_check
      _
    $region31: #{tpu_custom_call.1} parent=1 // pred_check_branch
      %241 = sbr.rel (0) target = $region33
    $region32: #{tpu_custom_call.1} parent=1 // pred_region
      %s243 = ssub.s32 1024, 1024
      %244 = vsyncadd [#allocation9], %s243
      %s246 = sshll.u32 [#allocation8], 4
      %s247 = int_to_ptr.vmem [resolvable:$true] %s246
      %249 = dma.vmem_to_hbm [thread:$0]  %s247, 1024, %s5, [#allocation9]
    $region33: #{tpu_custom_call.1} parent=1 // pred_fallthru
      _
    // Predicated region
    $region34: #{tpu_custom_call.1} parent=1 // pred_check
      _
    $region35: #{tpu_custom_call.1} parent=1 // pred_check_branch
      %251 = sbr.rel (0) target = $region37
    $region36: #{tpu_custom_call.1} parent=1 // pred_region
      %s253 = ssub.s32 1024, 1024
      %254 = vsyncadd [#allocation9], %s253
      %s256 = sshll.u32 [#allocation10], 4
      %s257 = int_to_ptr.vmem [resolvable:$true] %s256
      %259 = dma.vmem_to_hbm [thread:$0]  %s257, 1024, %s6, [#allocation9]
    $region37: #{tpu_custom_call.1} parent=1 // pred_fallthru
      _
    // Predicated region
    $region38: #{tpu_custom_call.1} parent=1 // pred_check
      _
    $region39: #{tpu_custom_call.1} parent=1 // pred_check_branch
      %261 = sbr.rel (0) target = $region41
    $region40: #{tpu_custom_call.1} parent=1 // pred_region
      %262 = dma.done [#allocation4], 1024
    $region41: #{tpu_custom_call.1} parent=1 // pred_fallthru
      _
    // Predicated region
    $region42: #{tpu_custom_call.1} parent=1 // pred_check
      _
    $region43: #{tpu_custom_call.1} parent=1 // pred_check_branch
      %264 = sbr.rel (0) target = $region45
    $region44: #{tpu_custom_call.1} parent=1 // pred_region
      %265 = dma.done [#allocation9], 1024
    $region45: #{tpu_custom_call.1} parent=1 // pred_fallthru
      _
    // Predicated region
    $region46: #{tpu_custom_call.1} parent=1 // pred_check
      _
    $region47: #{tpu_custom_call.1} parent=1 // pred_check_branch
      %267 = sbr.rel (0) target = $region49
    $region48: #{tpu_custom_call.1} parent=1 // pred_region
      %268 = dma.done [#allocation9], 1024
    $region49: #{tpu_custom_call.1} parent=1 // pred_fallthru
      _
    %269 = vsyncpa [#allocation3], 1
    %270 = vsyncpa [#allocation6], 1
    %271 = vsyncpa [#allocation4], 1
    %272 = vsyncpa [#allocation9], 1

</llo_original>
